<compile_context>
chip_gen: v7x
topology: tpu7x:2x2x1
jax: 0.10.0
libtpu: 0.0.40
codegen_flags: <defaults>
</compile_context>

<pallas_src>
import math

import jax
import jax.numpy as jnp
from jax.experimental import pallas as pl
from jax.experimental.pallas import tpu as pltpu


# ----------------------------------------------------------------------------
# Fused Tucker-product kernel: two MXU matmuls, nothing else.
# ----------------------------------------------------------------------------
def _tucker_kernel(g_ref, kron_ref, w0_ref, o_ref):
    """out[A, B*C + C'] = sum_{a} W0[A,a] * (sum_{b,c} G[a,b,c] * W1[B,b] * W2[C,c]).

    g_ref   : (a, b*c)   mode-0 unfolding (row-major flatten) of the core tensor
    kron_ref: (b*c, B*C) kron(W1, W2)^T, built once in the wrapper
    w0_ref  : (A, a)     mode-0 factor (nn.Linear.weight layout)
    o_ref   : (A, B*C)   lane-dense flattened Tucker product (reshaped by wrapper)
    """
    f32 = jnp.float32
    s = jnp.dot(g_ref[...], kron_ref[...], preferred_element_type=f32)   # (a, B*C)
    o_ref[...] = jnp.dot(w0_ref[...], s, preferred_element_type=f32)     # (A, B*C)


# ----------------------------------------------------------------------------
# Wrapper (matches TensorFactorization.tucker_product for a rank-3 core)
# ----------------------------------------------------------------------------
def tucker_product(G, weights):
    # TODO(synk): only the rank-3 core case is fused here; the reference module
    # supports arbitrary core rank via its einsum chain.
    assert G.ndim == 3 and len(weights) == 3
    a, b, c = G.shape
    A = weights[0].shape[0]
    B = weights[1].shape[0]
    C = weights[2].shape[0]

    g_flat = G.reshape(a, b * c)          # mode-0 unfolding: free row-major reshape

    # kron(W1, W2)^T of shape (b*c, B*C):
    #   kron_t[b'*c + c', B'*C + C'] = W1[B', b'] * W2[C', c']
    # Tiny XLA broadcast-multiply (fuses into a single elementwise op); passing it
    # in costs one extra <0.1 us VMEM DMA and kills 4 of the previous 6 in-kernel
    # matmuls plus every iota/select op.
    w1t = weights[1].T                    # (b, B)
    w2t = weights[2].T                    # (c, C)
    kron_t = (w1t[:, None, :, None] * w2t[None, :, None, :]).reshape(b * c, B * C)

    flops = 2 * (a * (b * c) * (B * C) + A * a * (B * C))
    bytes_accessed = 4 * (a * b * c + (b * c) * (B * C) + A * a + A * B * C)

    out_flat = pl.pallas_call(
        _tucker_kernel,
        out_shape=jax.ShapeDtypeStruct((A, B * C), jnp.float32),
        in_specs=[pl.BlockSpec(memory_space=pltpu.MemorySpace.VMEM)] * 3,
        out_specs=pl.BlockSpec(memory_space=pltpu.MemorySpace.VMEM),
        cost_estimate=pl.CostEstimate(
            flops=flops, transcendentals=0, bytes_accessed=bytes_accessed),
    )(g_flat, kron_t, weights[0])

    # NOTE: for much larger dim_ori/dim_cor replace this single-block kernel with
    # a tiled grid: mark the A and B*C output axes "parallel" (so both v7x
    # TensorCores take half the grid) and the contracted axis "arbitrary"; size
    # blocks against v7x's 64 MiB physical / 32 MiB scoped VMEM (inputs are
    # double-buffered), and keep the contracted K >= 128 (v5e) / 256 (v6e, v7x)
    # per matmul so the MXU runs near full utilization.
    return out_flat.reshape(A, B, C)      # free row-major reshape back to dim_ori


# ----------------------------------------------------------------------------
# Module-equivalent parameter construction + forward
# ----------------------------------------------------------------------------
def init_tensor_factorization(key, dim_ori, dim_cor):
    """Parameter init mirroring TensorFactorization.__init__ (mode='tucker')."""
    stdv = 1.0 / math.sqrt(dim_cor[0]) * 0.001
    k_g, *k_ws = jax.random.split(key, 1 + len(dim_cor))
    # Reference: (torch.randn(dim_cor) - 0.5) * 2 * stdv  (shifted normal)
    G = (jax.random.normal(k_g, dim_cor, dtype=jnp.float32) - 0.5) * 2.0 * stdv
    weights = []
    for i, kw in enumerate(k_ws):
        # nn.Linear default init: U(-1/sqrt(in_features), 1/sqrt(in_features)),
        # weight shape (out_features, in_features) = (dim_ori[i], dim_cor[i])
        bound = 1.0 / math.sqrt(dim_cor[i])
        w = jax.random.uniform(
            kw, (dim_ori[i], dim_cor[i]),
            minval=-bound, maxval=bound, dtype=jnp.float32,
        )
        weights.append(w)
    return G, weights


def tensor_factorization_forward(x, G, weights):
    # mode='tucker': x is accepted but ignored by the reference forward.
    # NOTE (per perf review): the output depends only on (G, weights); in an
    # inference/eval loop where the parameters are frozen, hoist/cache this
    # call outside the loop — re-running it per step is pure launch overhead.
    del x
    return tucker_product(G, weights)


if __name__ == "__main__":
    key = jax.random.PRNGKey(0)

    dim_cor = (8, 8, 8)      # core tensor size
    dim_ori = (16, 16, 16)   # reconstructed tensor size

    k_params, k_x = jax.random.split(key)
    G, weights = init_tensor_factorization(k_params, dim_ori, dim_cor)

    # x is accepted by forward() but unused in 'tucker' mode
    x = jax.random.normal(k_x, (2, 4, 16, 16), dtype=jnp.float32)

    fwd = jax.jit(tensor_factorization_forward)
    out = fwd(x, G, tuple(weights))
    out = jax.block_until_ready(out)

    # sanity check against a pure-JAX einsum reference of the same chain
    ref = jnp.einsum("abc,Aa,Bb,Cc->ABC", G, weights[0], weights[1], weights[2])
    assert out.shape == dim_ori, out.shape
    assert jnp.allclose(out, ref, atol=1e-5, rtol=1e-5)

    print("KERNEL_OK")
</pallas_src>

<mosaic_0001>
module attributes {stable_mosaic.version = 11 : i64} {
  func.func @_tucker_kernel(%arg0: memref<8x64xf32, #tpu.memory_space<vmem>>, %arg1: memref<64x256xf32, #tpu.memory_space<vmem>>, %arg2: memref<16x8xf32, #tpu.memory_space<vmem>>, %arg3: memref<16x256xf32, #tpu.memory_space<vmem>>) attributes {dimension_semantics = [], scalar_prefetch = 0 : i64, scratch_operands = 0 : i64, tpu.core_type = #tpu.core_type<tc>} {
    %c0 = arith.constant 0 : index
    %c0_0 = arith.constant 0 : index
    %0 = vector.load %arg0[%c0, %c0_0] : memref<8x64xf32, #tpu.memory_space<vmem>>, vector<8x64xf32>
    %c0_1 = arith.constant 0 : index
    %c0_2 = arith.constant 0 : index
    %1 = vector.load %arg1[%c0_1, %c0_2] : memref<64x256xf32, #tpu.memory_space<vmem>>, vector<64x256xf32>
    %cst = arith.constant dense<0.000000e+00> : vector<8x256xf32>
    %2 = tpu.matmul %0, %1, %cst {dimension_numbers = #tpu.dot_dimension_numbers<[1], [0], [0], [1], [0, 0, 1, 1], [], []>} : vector<8x64xf32>, vector<64x256xf32>, vector<8x256xf32> -> vector<8x256xf32>
    %c0_3 = arith.constant 0 : index
    %c0_4 = arith.constant 0 : index
    %3 = vector.load %arg2[%c0_3, %c0_4] : memref<16x8xf32, #tpu.memory_space<vmem>>, vector<16x8xf32>
    %cst_5 = arith.constant dense<0.000000e+00> : vector<16x256xf32>
    %4 = tpu.matmul %3, %2, %cst_5 {dimension_numbers = #tpu.dot_dimension_numbers<[1], [0], [0], [1], [0, 0, 1, 1], [], []>} : vector<16x8xf32>, vector<8x256xf32>, vector<16x256xf32> -> vector<16x256xf32>
    %c0_6 = arith.constant 0 : index
    %c0_7 = arith.constant 0 : index
    %5 = vector.load %arg3[%c0_6, %c0_7] : memref<16x256xf32, #tpu.memory_space<vmem>>, vector<16x256xf32>
    tpu.vector_store %arg3[%c0_6, %c0_7], %4 {strides = array<i32>} : memref<16x256xf32, #tpu.memory_space<vmem>>, vector<16x256xf32>,
    return
  }
}

</mosaic_0001>

<llo_original>
// kernel: tensor_factorization_forward.1
$region0: #{tensor_factorization_forward.1}
  #allocation0 [shape = 'u32[]', space=smem, size = 0x4, offset = 0x4, fixed_abs, tag = 'smem constant byte address 0x4 - core index']
  #allocation1 [shape = 'u32[144,128]{1,0:T(1,128)}', space=vmem, size = 0x12000, scoped, tag = 'internal scratch']
  %s0 = inlined_call_operand.vmem [shape: f32[8,64], index: 0, kind: input, shape index: {}]
  %s1 = inlined_call_operand.vmem [shape: f32[64,256], index: 1, kind: input, shape index: {}]
  %s2 = inlined_call_operand.vmem [shape: f32[16,8], index: 2, kind: input, shape index: {}]
  %s3 = inlined_call_operand.vmem [shape: f32[16,256], index: 3, kind: output, shape index: {}]
  %s4 = sld [smem:[#allocation0]]
  $region22: #{tensor_factorization_forward.1} parent=0
    _
  %s6 = ssub.s32 1, %s4
  %s7 = scalar_select 0, %s6, %s4
  // Predicated region
  $region2: #{tensor_factorization_forward.1} parent=0 // pred_check
    _
  $region3: #{tensor_factorization_forward.1} parent=0 // pred_check_branch
    %9 = sbr.rel (0) target = $region5
  $region4: #{tensor_factorization_forward.1} parent=0 // pred_region
    _
  $region5: #{tensor_factorization_forward.1} parent=0 // pred_fallthru
    _
  // Predicated region
  $region6: #{tensor_factorization_forward.1} parent=0 // pred_check
    _
  $region7: #{tensor_factorization_forward.1} parent=0 // pred_check_branch
    %11 = sbr.rel (0) target = $region9
  $region8: #{tensor_factorization_forward.1} parent=0 // pred_region
    _
  $region9: #{tensor_factorization_forward.1} parent=0 // pred_fallthru
    _
  // Predicated region
  $region10: #{tensor_factorization_forward.1} parent=0 // pred_check
    _
  $region11: #{tensor_factorization_forward.1} parent=0 // pred_check_branch
    %13 = sbr.rel (0) target = $region13
  $region12: #{tensor_factorization_forward.1} parent=0 // pred_region
    _
  $region13: #{tensor_factorization_forward.1} parent=0 // pred_fallthru
    _
  %v14 = vld [vmem:[%s0] sm:$0xff]
  %v15 = vld [vmem:[%s1] sm:$0xff]
  %v16 = vld [vmem:[%s1 + $0x8] sm:$0xff]
  %v17 = vld [vmem:[%s1 + $0x10] sm:$0xff]
  %v18 = vld [vmem:[%s1 + $0x18] sm:$0xff]
  %v19 = vld [vmem:[%s1 + $0x20] sm:$0xff]
  %v20 = vld [vmem:[%s1 + $0x28] sm:$0xff]
  %v21 = vld [vmem:[%s1 + $0x30] sm:$0xff]
  %v22 = vld [vmem:[%s1 + $0x38] sm:$0xff]
  %v23 = vld [vmem:[%s1 + $0x40] sm:$0xff]
  %v24 = vld [vmem:[%s1 + $0x48] sm:$0xff]
  %v25 = vld [vmem:[%s1 + $0x50] sm:$0xff]
  %v26 = vld [vmem:[%s1 + $0x58] sm:$0xff]
  %v27 = vld [vmem:[%s1 + $0x60] sm:$0xff]
  %v28 = vld [vmem:[%s1 + $0x68] sm:$0xff]
  %v29 = vld [vmem:[%s1 + $0x70] sm:$0xff]
  %v30 = vld [vmem:[%s1 + $0x78] sm:$0xff]
  %vm31 = vcmask 523264
  %v33 = vsel %vm31, %v14, 0
  %35 = vmatprep.subr.mxu0 %v16
  %36 = vmatpush1.msra.mxu0 %v15
  %37 = vmatprep.subr.mxu0 %v18
  %38 = vmatpush1.msra.mxu0 %v17
  %39 = vmatprep.subr.mxu0 %v20
  %40 = vmatpush1.msra.mxu0 %v19
  %41 = vmatprep.subr.mxu0 %v22
  %42 = vmatpush1.msra.mxu0 %v21
  %43 = vmatprep.subr.mxu0 %v24
  %44 = vmatpush1.msra.mxu0 %v23
  %45 = vmatprep.subr.mxu0 %v26
  %46 = vmatpush1.msra.mxu0 %v25
  %47 = vmatprep.subr.mxu0 %v28
  %48 = vmatpush1.msra.mxu0 %v27
  %49 = vmatprep.subr.mxu0 %v30
  %50 = vmatpush1.msra.mxu0 %v29
  %51 = vmatprep.subr.mxu0 0.0
  %52 = vmatpush1.msra.mxu0 0.0
  %53 = vmatprep.subr.mxu0 0.0
  %54 = vmatpush1.msra.mxu0 0.0
  %55 = vmatprep.subr.mxu0 0.0
  %56 = vmatpush1.msra.mxu0 0.0
  %57 = vmatprep.subr.mxu0 0.0
  %58 = vmatpush1.msra.mxu0 0.0
  %59 = vmatprep.subr.mxu0 0.0
  %60 = vmatpush1.msra.mxu0 0.0
  %61 = vmatprep.subr.mxu0 0.0
  %62 = vmatpush1.msra.mxu0 0.0
  %63 = vmatprep.subr.mxu0 0.0
  %64 = vmatpush1.msra.mxu0 0.0
  %65 = vmatprep.subr.mxu0 0.0
  %66 = vmatpush1.msra.mxu0 0.0
  %67 = vmatprep.subr.mxu0 0.0
  %68 = vmatpush1.msra.mxu0 0.0
  %69 = vmatprep.subr.mxu0 0.0
  %70 = vmatpush1.msra.mxu0 0.0
  %71 = vmatprep.subr.mxu0 0.0
  %72 = vmatpush1.msra.mxu0 0.0
  %73 = vmatprep.subr.mxu0 0.0
  %74 = vmatpush1.msra.mxu0 0.0
  %75 = vmatprep.subr.mxu0 0.0
  %76 = vmatpush1.msra.mxu0 0.0
  %77 = vmatprep.subr.mxu0 0.0
  %78 = vmatpush1.msra.mxu0 0.0
  %79 = vmatprep.subr.mxu0 0.0
  %80 = vmatpush1.msra.mxu0 0.0
  %81 = vmatprep.subr.mxu0 0.0
  %82 = vmatpush1.msra.mxu0 0.0
  %83 = vmatprep.subr.mxu0 0.0
  %84 = vmatpush1.msra.mxu0 0.0
  %85 = vmatprep.subr.mxu0 0.0
  %86 = vmatpush1.msra.mxu0 0.0
  %87 = vmatprep.subr.mxu0 0.0
  %88 = vmatpush1.msra.mxu0 0.0
  %89 = vmatprep.subr.mxu0 0.0
  %90 = vmatpush1.msra.mxu0 0.0
  %91 = vmatprep.subr.mxu0 0.0
  %92 = vmatpush1.msra.mxu0 0.0
  %93 = vmatprep.subr.mxu0 0.0
  %94 = vmatpush1.msra.mxu0 0.0
  %95 = vmatprep.subr.mxu0 0.0
  %96 = vmatpush1.msra.mxu0 0.0
  %97 = vmatprep.subr.mxu0 0.0
  %98 = vmatpush1.msra.mxu0 0.0
  %99 = vmatprep.mubr.f32.mxu0 0.0
  %100 = vmatmul.mubr.f32.gmra.mrb[0].mxu0 %v33
  %v101 = vpop.f32.mrb[0].mxu0
  %v102 = vadd.f32 0.0, %v101
  %v103 = vpop.f32.mrb[0].mxu0
  %v104 = vadd.f32 0.0, %v103
  %105 = vdwg.mxu0
  %v106 = vld [vmem:[%s2] sm:$0xff]
  %v107 = vld [vmem:[%s2 + $0x8] sm:$0xff]
  %vm108 = vcmask 64512
  %v110 = vsel %vm108, %v106, 0
  %v113 = vsel %vm108, %v107, 0
  %115 = vmatprep.subr.mxu0 %v104
  %116 = vmatpush1.msra.mxu0 %v102
  %117 = vmatprep.subr.mxu0 0.0
  %118 = vmatpush1.msra.mxu0 0.0
  %119 = vmatprep.subr.mxu0 0.0
  %120 = vmatpush1.msra.mxu0 0.0
  %121 = vmatprep.subr.mxu0 0.0
  %122 = vmatpush1.msra.mxu0 0.0
  %123 = vmatprep.subr.mxu0 0.0
  %124 = vmatpush1.msra.mxu0 0.0
  %125 = vmatprep.subr.mxu0 0.0
  %126 = vmatpush1.msra.mxu0 0.0
  %127 = vmatprep.subr.mxu0 0.0
  %128 = vmatpush1.msra.mxu0 0.0
  %129 = vmatprep.subr.mxu0 0.0
  %130 = vmatpush1.msra.mxu0 0.0
  %131 = vmatprep.subr.mxu0 0.0
  %132 = vmatpush1.msra.mxu0 0.0
  %133 = vmatprep.subr.mxu0 0.0
  %134 = vmatpush1.msra.mxu0 0.0
  %135 = vmatprep.subr.mxu0 0.0
  %136 = vmatpush1.msra.mxu0 0.0
  %137 = vmatprep.subr.mxu0 0.0
  %138 = vmatpush1.msra.mxu0 0.0
  %139 = vmatprep.subr.mxu0 0.0
  %140 = vmatpush1.msra.mxu0 0.0
  %141 = vmatprep.subr.mxu0 0.0
  %142 = vmatpush1.msra.mxu0 0.0
  %143 = vmatprep.subr.mxu0 0.0
  %144 = vmatpush1.msra.mxu0 0.0
  %145 = vmatprep.subr.mxu0 0.0
  %146 = vmatpush1.msra.mxu0 0.0
  %147 = vmatprep.subr.mxu0 0.0
  %148 = vmatpush1.msra.mxu0 0.0
  %149 = vmatprep.subr.mxu0 0.0
  %150 = vmatpush1.msra.mxu0 0.0
  %151 = vmatprep.subr.mxu0 0.0
  %152 = vmatpush1.msra.mxu0 0.0
  %153 = vmatprep.subr.mxu0 0.0
  %154 = vmatpush1.msra.mxu0 0.0
  %155 = vmatprep.subr.mxu0 0.0
  %156 = vmatpush1.msra.mxu0 0.0
  %157 = vmatprep.subr.mxu0 0.0
  %158 = vmatpush1.msra.mxu0 0.0
  %159 = vmatprep.subr.mxu0 0.0
  %160 = vmatpush1.msra.mxu0 0.0
  %161 = vmatprep.subr.mxu0 0.0
  %162 = vmatpush1.msra.mxu0 0.0
  %163 = vmatprep.subr.mxu0 0.0
  %164 = vmatpush1.msra.mxu0 0.0
  %165 = vmatprep.subr.mxu0 0.0
  %166 = vmatpush1.msra.mxu0 0.0
  %167 = vmatprep.subr.mxu0 0.0
  %168 = vmatpush1.msra.mxu0 0.0
  %169 = vmatprep.subr.mxu0 0.0
  %170 = vmatpush1.msra.mxu0 0.0
  %171 = vmatprep.subr.mxu0 0.0
  %172 = vmatpush1.msra.mxu0 0.0
  %173 = vmatprep.subr.mxu0 0.0
  %174 = vmatpush1.msra.mxu0 0.0
  %175 = vmatprep.subr.mxu0 0.0
  %176 = vmatpush1.msra.mxu0 0.0
  %177 = vmatprep.subr.mxu0 0.0
  %178 = vmatpush1.msra.mxu0 0.0
  %179 = vmatprep.mubr.f32.mxu0 0.0
  %180 = vmatmul.mubr.f32.gmra.mrb[0].mxu0 %v110
  %v181 = vpop.f32.mrb[0].mxu0
  %v182 = vadd.f32 0.0, %v181
  %v183 = vpop.f32.mrb[0].mxu0
  %v184 = vadd.f32 0.0, %v183
  %185 = vmatprep.mubr.f32.mxu0 0.0
  %186 = vmatmul.mubr.f32.gmra.mrb[0].mxu0 %v113
  %v187 = vpop.f32.mrb[0].mxu0
  %v188 = vadd.f32 0.0, %v187
  %v189 = vpop.f32.mrb[0].mxu0
  %v190 = vadd.f32 0.0, %v189
  %191 = vdwg.mxu0
  %192 = vst [vmem:[%s3] sm:$0xff] %v182
  %193 = vst [vmem:[%s3 + $0x8] sm:$0xff] %v184
  %194 = vst [vmem:[%s3 + $0x10] sm:$0xff] %v188
  %195 = vst [vmem:[%s3 + $0x18] sm:$0xff] %v190
  // Predicated region
  $region14: #{tensor_factorization_forward.1} parent=0 // pred_check
    _
  $region15: #{tensor_factorization_forward.1} parent=0 // pred_check_branch
    %197 = sbr.rel (0) target = $region17
  $region16: #{tensor_factorization_forward.1} parent=0 // pred_region
    _
  $region17: #{tensor_factorization_forward.1} parent=0 // pred_fallthru
    _
  // Predicated region
  $region18: #{tensor_factorization_forward.1} parent=0 // pred_check
    _
  $region19: #{tensor_factorization_forward.1} parent=0 // pred_check_branch
    %199 = sbr.rel (0) target = $region21
  $region20: #{tensor_factorization_forward.1} parent=0 // pred_region
    _
  $region21: #{tensor_factorization_forward.1} parent=0 // pred_fallthru
    _

</llo_original>
